<compile_context>
chip_gen: v7x
topology: tpu7x:2x2x1
jax: 0.10.0
libtpu: 0.0.40
codegen_flags: <defaults>
</compile_context>

<pallas_src>
import math

import numpy as np
import jax
import jax.numpy as jnp
from jax.experimental import pallas as pl
from jax.experimental.pallas import tpu as pltpu

NHEAD = 4
LN_EPS = 1e-5
NEG_INF = -1e30          # plain Python float -> inlined literal, never a captured const

_VMEM = pl.BlockSpec(memory_space=pltpu.MemorySpace.VMEM)


def _round_up(x, m):
    return ((x + m - 1) // m) * m


def _layer_norm(x, gamma, beta, eps=LN_EPS):
    mu = jnp.mean(x, axis=-1, keepdims=True)
    var = jnp.mean((x - mu) ** 2, axis=-1, keepdims=True)
    return (x - mu) * jax.lax.rsqrt(var + eps) * gamma + beta


# ----------------------------------------------------------------------------
# Kernel 1a: h = x_in @ W1 + b1     (weights pre-transposed to [in, out])
# ----------------------------------------------------------------------------
def fc1_kernel(x_ref, w1t_ref, b1_ref, o_ref):
    o_ref[...] = (jnp.dot(x_ref[...], w1t_ref[...],
                          preferred_element_type=jnp.float32) + b1_ref[...])


# ----------------------------------------------------------------------------
# Kernel 1b: out_tile = relu(adj_tile @ h)
# Row-tiled over adj so VMEM use is O(tm * N) even for large graphs.
# ----------------------------------------------------------------------------
def adj_relu_kernel(adj_ref, h_ref, o_ref):
    o_ref[...] = jnp.maximum(
        jnp.dot(adj_ref[...], h_ref[...], preferred_element_type=jnp.float32),
        0.0)


def fc1_adj(x_in, adj, w1t, b1, *, row_tile=512):
    N, _ = x_in.shape
    H = w1t.shape[1]
    N_pad = _round_up(N, 8)
    if N_pad > row_tile:
        N_pad = _round_up(N_pad, row_tile)
        tm = row_tile
    else:
        tm = N_pad
    if N_pad != N:
        # zero padding: padded adj rows/cols are zero, so results for real
        # nodes are unchanged and padded output rows are exactly zero.
        x_in = jnp.pad(x_in, ((0, N_pad - N), (0, 0)))
        adj = jnp.pad(adj, ((0, N_pad - N), (0, N_pad - N)))

    h = pl.pallas_call(
        fc1_kernel,
        out_shape=jax.ShapeDtypeStruct((N_pad, H), jnp.float32),
        in_specs=[_VMEM, _VMEM, _VMEM],
        out_specs=_VMEM,
    )(x_in, w1t, b1.reshape(1, -1))

    return pl.pallas_call(
        adj_relu_kernel,
        out_shape=jax.ShapeDtypeStruct((N_pad, H), jnp.float32),
        grid=(N_pad // tm,),
        in_specs=[pl.BlockSpec((tm, N_pad), lambda i: (i, 0)),
                  pl.BlockSpec((N_pad, H), lambda i: (0, 0))],
        out_specs=pl.BlockSpec((tm, H), lambda i: (i, 0)),
        compiler_params=pltpu.CompilerParams(
            dimension_semantics=("parallel",),
            vmem_limit_bytes=48 * 1024 * 1024),
    )(adj, h)


# ----------------------------------------------------------------------------
# Kernel 2 (fused): TransformerEncoderLayer (4-head MHA with key padding mask,
# post-norm, 2H relu-FFN) + masked sum-pool + LayerNorm + relu(fc3) + fc4 +
# log_softmax — whole batch in one program (no grid).
# ----------------------------------------------------------------------------
def encoder_pool_head_kernel(x_ref, kmask_ref, pmat_ref,
                             wqkv_ref, bqkv_ref, wot_ref, bo_ref,
                             g1_ref, be1_ref, wf1_ref, bf1_ref,
                             wf2_ref, bf2_ref, g2_ref, be2_ref,
                             gp_ref, bp_ref, w3_ref, b3_ref,
                             w4_ref, b4_ref, o_ref):
    BL, H = x_ref.shape                  # B*L rows (L padded to a multiple of 8)
    B, _, L = kmask_ref.shape
    dh = H // NHEAD
    scale = 1.0 / math.sqrt(dh)

    x = x_ref[...]                       # [B*L, H]   (padding rows are zero)
    kmask = kmask_ref[...]               # [B, 1, L]  (1 = real node, 0 = padding)

    # Fused in-projection: single wide MXU matmul for Q, K, V.
    qkv = jnp.dot(x, wqkv_ref[...],
                  preferred_element_type=jnp.float32) + bqkv_ref[...]   # [B*L, 3H]
    wot = wot_ref[...]                   # [H, H] = W_O^T (rows = per-head slices)

    # Multi-head attention, batched over all graphs at once.  Each head's
    # output is folded directly into its slice of the out-projection.
    attn = None
    for hi in range(NHEAD):
        q = qkv[:, hi * dh:(hi + 1) * dh].reshape(B, L, dh)
        k = qkv[:, H + hi * dh:H + (hi + 1) * dh].reshape(B, L, dh)
        v = qkv[:, 2 * H + hi * dh:2 * H + (hi + 1) * dh].reshape(B, L, dh)
        s = jnp.einsum('bqd,bkd->bqk', q, k,
                       preferred_element_type=jnp.float32) * scale
        s = jnp.where(kmask > 0.5, s, NEG_INF)          # key padding mask
        s = s - jnp.max(s, axis=-1, keepdims=True)
        p = jnp.exp(s)
        p = p / jnp.sum(p, axis=-1, keepdims=True)
        oh = jnp.einsum('bqk,bkd->bqd', p, v,
                        preferred_element_type=jnp.float32)             # [B, L, dh]
        contrib = jnp.dot(oh.reshape(BL, dh), wot[hi * dh:(hi + 1) * dh, :],
                          preferred_element_type=jnp.float32)           # [B*L, H]
        attn = contrib if attn is None else attn + contrib
    attn = attn + bo_ref[...]
    # dropout1: identity (inference)
    x1 = _layer_norm(x + attn, g1_ref[...], be1_ref[...])

    f = jnp.maximum(
        jnp.dot(x1, wf1_ref[...], preferred_element_type=jnp.float32) + bf1_ref[...],
        0.0)
    # internal dropout: identity (inference)
    f = jnp.dot(f, wf2_ref[...], preferred_element_type=jnp.float32) + bf2_ref[...]
    # dropout2: identity (inference)
    x2 = _layer_norm(x1 + f, g2_ref[...], be2_ref[...])

    # Masked per-graph sum (== scatter_add over idx) expressed as one matmul:
    # pool_mat[b, b*L + j] = valid[b, j], so padded slots never contribute.
    pooled = jnp.dot(pmat_ref[...], x2, preferred_element_type=jnp.float32)  # [B, H]
    y = _layer_norm(pooled, gp_ref[...], bp_ref[...])
    # dropout: identity (inference)
    hh = jnp.maximum(
        jnp.dot(y, w3_ref[...], preferred_element_type=jnp.float32) + b3_ref[...],
        0.0)
    logits = jnp.dot(hh, w4_ref[...],
                     preferred_element_type=jnp.float32) + b4_ref[...]
    m = jnp.max(logits, axis=-1, keepdims=True)
    lse = m + jnp.log(jnp.sum(jnp.exp(logits - m), axis=-1, keepdims=True))
    o_ref[...] = logits - lse


def encoder_pool_head(x_flat, kmask, pool_mat, prep, n_class):
    B = kmask.shape[0]
    args = (x_flat, kmask, pool_mat,
            prep["wqkv"], prep["bqkv"], prep["wo_t"], prep["bo"],
            prep["ln1_g"], prep["ln1_b"], prep["wf1"], prep["bf1"],
            prep["wf2"], prep["bf2"], prep["ln2_g"], prep["ln2_b"],
            prep["ln_g"], prep["ln_b"], prep["w3"], prep["b3"],
            prep["w4"], prep["b4"])
    return pl.pallas_call(
        encoder_pool_head_kernel,
        out_shape=jax.ShapeDtypeStruct((B, n_class), jnp.float32),
        in_specs=[_VMEM] * len(args),
        out_specs=_VMEM,
        compiler_params=pltpu.CompilerParams(
            vmem_limit_bytes=48 * 1024 * 1024),
    )(*args)


# ----------------------------------------------------------------------------
# Host-side parameter re-layout (one time): transpose to [in, out], fuse QKV,
# keep the out-projection as W_O^T, make biases / LN params 2-D [1, d].
# ----------------------------------------------------------------------------
def prepare_params(p):
    return {
        "w1t": jnp.transpose(p["w1"]),
        "b1": p["b1"],
        "wqkv": jnp.concatenate([jnp.transpose(p["wq"]),
                                 jnp.transpose(p["wk"]),
                                 jnp.transpose(p["wv"])], axis=1),      # [H, 3H]
        "bqkv": jnp.concatenate([p["bq"], p["bk"], p["bv"]]).reshape(1, -1),
        "wo_t": jnp.transpose(p["wo"]),                                 # [H, H]
        "bo": p["bo"].reshape(1, -1),
        "ln1_g": p["ln1_g"].reshape(1, -1), "ln1_b": p["ln1_b"].reshape(1, -1),
        "wf1": jnp.transpose(p["wf1"]), "bf1": p["bf1"].reshape(1, -1),
        "wf2": jnp.transpose(p["wf2"]), "bf2": p["bf2"].reshape(1, -1),
        "ln2_g": p["ln2_g"].reshape(1, -1), "ln2_b": p["ln2_b"].reshape(1, -1),
        "ln_g": p["ln_g"].reshape(1, -1), "ln_b": p["ln_b"].reshape(1, -1),
        "w3": jnp.transpose(p["w3"]), "b3": p["b3"].reshape(1, -1),
        "w4": jnp.transpose(p["w4"]), "b4": p["b4"].reshape(1, -1),
    }


# ----------------------------------------------------------------------------
# Vectorized host-side batch-layout construction (pad_sequence bookkeeping).
# L is bucketed to a multiple of 8 so the sublane dim is aligned and recompiles
# only happen per bucket, not per distinct max-graph-size.
# ----------------------------------------------------------------------------
def build_batch_layout(idx_np, counts_np):
    idx = np.asarray(idx_np, dtype=np.int64)
    counts = np.asarray(counts_np, dtype=np.int64)
    B = counts.shape[0]
    L = _round_up(max(int(counts.max()), 1), 8)

    order = np.argsort(idx, kind="stable")
    starts = np.zeros(B, dtype=np.int64)
    starts[1:] = np.cumsum(counts)[:-1]
    g = idx[order]
    pos = np.arange(idx.shape[0], dtype=np.int64) - starts[g]

    gather = np.zeros((B, L), dtype=np.int32)
    valid = np.zeros((B, L), dtype=np.float32)
    gather[g, pos] = order.astype(np.int32)
    valid[g, pos] = 1.0

    pool = np.zeros((B, B, L), dtype=np.float32)
    pool[np.arange(B), np.arange(B), :] = valid           # block-diagonal valid mask

    return (jnp.asarray(gather.reshape(B * L)),
            jnp.asarray(valid),
            jnp.asarray(pool.reshape(B, B * L)),
            B, L)


# ----------------------------------------------------------------------------
# Full forward (glue in plain JAX / numpy)
# ----------------------------------------------------------------------------
def gtn_forward(x_in, adj, idx_np, counts_np, params, n_class):
    prep = prepare_params(params)

    # fc1 -> adj matmul -> relu (Pallas kernels 1a/1b, row-tiled adjacency)
    x_nodes = fc1_adj(x_in, adj, prep["w1t"], prep["b1"])          # [N_pad, H]

    # pad_sequence grouping: gather node rows into a flat [B*L, H] slab,
    # zero the padding slots (glue, plain JAX gather)
    gather, valid, pool_mat, B, L = build_batch_layout(idx_np, counts_np)
    x_flat = x_nodes[gather] * valid.reshape(B * L, 1)
    kmask = valid.reshape(B, 1, L)

    # fused encoder layer + scatter_add pool + LN + fc3/fc4 + log_softmax
    return encoder_pool_head(x_flat, kmask, pool_mat, prep, n_class)


# ----------------------------------------------------------------------------
# Deterministic parameter init (PyTorch-Linear-like uniform bounds)
# ----------------------------------------------------------------------------
def init_params(key, input_dim, hidden_dim, n_class):
    keys = jax.random.split(key, 9)

    def lin(k, out_d, in_d):
        bound = 1.0 / math.sqrt(in_d)
        kw, kb = jax.random.split(k)
        w = jax.random.uniform(kw, (out_d, in_d), jnp.float32, -bound, bound)
        b = jax.random.uniform(kb, (out_d,), jnp.float32, -bound, bound)
        return w, b

    H = hidden_dim
    p = {}
    p["w1"], p["b1"] = lin(keys[0], H, input_dim)
    p["wq"], p["bq"] = lin(keys[1], H, H)
    p["wk"], p["bk"] = lin(keys[2], H, H)
    p["wv"], p["bv"] = lin(keys[3], H, H)
    p["wo"], p["bo"] = lin(keys[4], H, H)
    p["wf1"], p["bf1"] = lin(keys[5], 2 * H, H)
    p["wf2"], p["bf2"] = lin(keys[6], H, 2 * H)
    p["ln1_g"] = jnp.ones((H,), jnp.float32)
    p["ln1_b"] = jnp.zeros((H,), jnp.float32)
    p["ln2_g"] = jnp.ones((H,), jnp.float32)
    p["ln2_b"] = jnp.zeros((H,), jnp.float32)
    p["ln_g"] = jnp.ones((H,), jnp.float32)
    p["ln_b"] = jnp.zeros((H,), jnp.float32)
    p["w3"], p["b3"] = lin(keys[7], H, H)
    p["w4"], p["b4"] = lin(keys[8], n_class, H)
    return p


if __name__ == "__main__":
    input_dim, hidden_dim, n_class = 8, 32, 5

    counts = np.array([5, 3, 6], dtype=np.int32)       # nodes per graph
    N = int(counts.sum())                               # total nodes = 14
    idx = np.repeat(np.arange(len(counts)), counts).astype(np.int32)

    key = jax.random.PRNGKey(0)
    k1, k2, k3 = jax.random.split(key, 3)
    x_in = jax.random.normal(k1, (N, input_dim), jnp.float32)

    # dense adjacency with self loops
    a = (jax.random.uniform(k2, (N, N)) < 0.3).astype(jnp.float32)
    adj = jnp.minimum(a + a.T + jnp.eye(N, dtype=jnp.float32), 1.0)

    params = init_params(k3, input_dim, hidden_dim, n_class)

    out = gtn_forward(x_in, adj, idx, counts, params, n_class)
    out = jax.block_until_ready(out)

    assert out.shape == (len(counts), n_class)
    assert bool(jnp.all(jnp.isfinite(out)))
    # log_softmax rows should (approximately) exp-sum to 1
    assert bool(jnp.all(jnp.abs(jnp.sum(jnp.exp(out), axis=1) - 1.0) < 1e-4))
    print("KERNEL_OK")
</pallas_src>

<mosaic_0001>
module attributes {stable_mosaic.version = 11 : i64} {
  func.func @fc1_kernel(%arg0: memref<16x8xf32, #tpu.memory_space<vmem>>, %arg1: memref<8x32xf32, #tpu.memory_space<vmem>>, %arg2: memref<1x32xf32, #tpu.memory_space<vmem>>, %arg3: memref<16x32xf32, #tpu.memory_space<vmem>>) attributes {dimension_semantics = [], scalar_prefetch = 0 : i64, scratch_operands = 0 : i64, tpu.core_type = #tpu.core_type<tc>} {
    %c0 = arith.constant 0 : index
    %c0_0 = arith.constant 0 : index
    %0 = vector.load %arg0[%c0, %c0_0] : memref<16x8xf32, #tpu.memory_space<vmem>>, vector<16x8xf32>
    %c0_1 = arith.constant 0 : index
    %c0_2 = arith.constant 0 : index
    %1 = vector.load %arg1[%c0_1, %c0_2] : memref<8x32xf32, #tpu.memory_space<vmem>>, vector<8x32xf32>
    %cst = arith.constant dense<0.000000e+00> : vector<16x32xf32>
    %2 = tpu.matmul %0, %1, %cst {dimension_numbers = #tpu.dot_dimension_numbers<[1], [0], [0], [1], [0, 0, 1, 1], [], []>} : vector<16x8xf32>, vector<8x32xf32>, vector<16x32xf32> -> vector<16x32xf32>
    %c0_3 = arith.constant 0 : index
    %c0_4 = arith.constant 0 : index
    %3 = vector.load %arg2[%c0_3, %c0_4] : memref<1x32xf32, #tpu.memory_space<vmem>>, vector<1x32xf32>
    %4 = vector.broadcast %3 : vector<1x32xf32> to vector<16x32xf32>
    %5 = arith.addf %2, %4 : vector<16x32xf32>
    %c0_5 = arith.constant 0 : index
    %c0_6 = arith.constant 0 : index
    %6 = vector.load %arg3[%c0_5, %c0_6] : memref<16x32xf32, #tpu.memory_space<vmem>>, vector<16x32xf32>
    tpu.vector_store %arg3[%c0_5, %c0_6], %5 {strides = array<i32>} : memref<16x32xf32, #tpu.memory_space<vmem>>, vector<16x32xf32>,
    return
  }
}

</mosaic_0001>

<llo_original>
// kernel: tpu_custom_call.1
$region0: #{tpu_custom_call.1}
  #allocation0 [shape = 'u32[]', space=smem, size = 0x4, offset = 0x4, fixed_abs, tag = 'smem constant byte address 0x4 - core index']
  #allocation1 [shape = 'u32[144,128]{1,0:T(1,128)}', space=vmem, size = 0x12000, scoped, tag = 'internal scratch']
  %s0 = inlined_call_operand.vmem [shape: f32[16,8], index: 0, kind: input, shape index: {}]
  %s1 = inlined_call_operand.vmem [shape: f32[8,32], index: 1, kind: input, shape index: {}]
  %s2 = inlined_call_operand.vmem [shape: f32[1,32], index: 2, kind: input, shape index: {}]
  %s3 = inlined_call_operand.hbm [shape: f32[16,32], index: 3, kind: output, shape index: {}]
  %s4 = sld [smem:[#allocation0]]
  $region22: #{tpu_custom_call.1} parent=0
    _
  %s6 = ssub.s32 1, %s4
  %s7 = scalar_select 0, %s6, %s4
  $region1: #{tpu_custom_call.1} parent=0
    #allocation2 [shape = 'u8[8192]{0}', space=vmem, size = 0x2000, scoped, tag = 'output window, operand 0, single buffered']
    #allocation3 [shape = 's32[1]{0}', space=sflag, size = 0x4, scoped, tag = 'scoped memory for tpu_custom_call.1']
    %8 = vsyncpa [#allocation3], 0
    // Predicated region
    $region2: #{tpu_custom_call.1} parent=1 // pred_check
      _
    $region3: #{tpu_custom_call.1} parent=1 // pred_check_branch
      %10 = sbr.rel (0) target = $region5
    $region4: #{tpu_custom_call.1} parent=1 // pred_region
      _
    $region5: #{tpu_custom_call.1} parent=1 // pred_fallthru
      _
    // Predicated region
    $region6: #{tpu_custom_call.1} parent=1 // pred_check
      _
    $region7: #{tpu_custom_call.1} parent=1 // pred_check_branch
      %12 = sbr.rel (0) target = $region9
    $region8: #{tpu_custom_call.1} parent=1 // pred_region
      _
    $region9: #{tpu_custom_call.1} parent=1 // pred_fallthru
      _
    // Predicated region
    $region10: #{tpu_custom_call.1} parent=1 // pred_check
      _
    $region11: #{tpu_custom_call.1} parent=1 // pred_check_branch
      %14 = sbr.rel (0) target = $region13
    $region12: #{tpu_custom_call.1} parent=1 // pred_region
      _
    $region13: #{tpu_custom_call.1} parent=1 // pred_fallthru
      _
    %v15 = vld [vmem:[%s0] sm:$0xff]
    %v16 = vld [vmem:[%s0 + $0x8] sm:$0xff]
    %v17 = vld [vmem:[%s1] sm:$0xff]
    %v18 = vld [vmem:[%s2] sm:$0x1]
    %v20 = vlaneseq
    %v21 = vshrl.u32 %v20, 7
    %v22 = vsub.s32 0, %v21
    %v23 = vrot.slane %v18, %v22
    %vm25 = vcmask 64512
    %v27 = vsel %vm25, %v15, 0
    %v30 = vsel %vm25, %v16, 0
    %32 = vmatprep.subr.mxu0 0.0
    %33 = vmatpush1.msra.mxu0 %v17
    %34 = vmatprep.subr.mxu0 0.0
    %35 = vmatpush1.msra.mxu0 0.0
    %36 = vmatprep.subr.mxu0 0.0
    %37 = vmatpush1.msra.mxu0 0.0
    %38 = vmatprep.subr.mxu0 0.0
    %39 = vmatpush1.msra.mxu0 0.0
    %40 = vmatprep.subr.mxu0 0.0
    %41 = vmatpush1.msra.mxu0 0.0
    %42 = vmatprep.subr.mxu0 0.0
    %43 = vmatpush1.msra.mxu0 0.0
    %44 = vmatprep.subr.mxu0 0.0
    %45 = vmatpush1.msra.mxu0 0.0
    %46 = vmatprep.subr.mxu0 0.0
    %47 = vmatpush1.msra.mxu0 0.0
    %48 = vmatprep.subr.mxu0 0.0
    %49 = vmatpush1.msra.mxu0 0.0
    %50 = vmatprep.subr.mxu0 0.0
    %51 = vmatpush1.msra.mxu0 0.0
    %52 = vmatprep.subr.mxu0 0.0
    %53 = vmatpush1.msra.mxu0 0.0
    %54 = vmatprep.subr.mxu0 0.0
    %55 = vmatpush1.msra.mxu0 0.0
    %56 = vmatprep.subr.mxu0 0.0
    %57 = vmatpush1.msra.mxu0 0.0
    %58 = vmatprep.subr.mxu0 0.0
    %59 = vmatpush1.msra.mxu0 0.0
    %60 = vmatprep.subr.mxu0 0.0
    %61 = vmatpush1.msra.mxu0 0.0
    %62 = vmatprep.subr.mxu0 0.0
    %63 = vmatpush1.msra.mxu0 0.0
    %64 = vmatprep.subr.mxu0 0.0
    %65 = vmatpush1.msra.mxu0 0.0
    %66 = vmatprep.subr.mxu0 0.0
    %67 = vmatpush1.msra.mxu0 0.0
    %68 = vmatprep.subr.mxu0 0.0
    %69 = vmatpush1.msra.mxu0 0.0
    %70 = vmatprep.subr.mxu0 0.0
    %71 = vmatpush1.msra.mxu0 0.0
    %72 = vmatprep.subr.mxu0 0.0
    %73 = vmatpush1.msra.mxu0 0.0
    %74 = vmatprep.subr.mxu0 0.0
    %75 = vmatpush1.msra.mxu0 0.0
    %76 = vmatprep.subr.mxu0 0.0
    %77 = vmatpush1.msra.mxu0 0.0
    %78 = vmatprep.subr.mxu0 0.0
    %79 = vmatpush1.msra.mxu0 0.0
    %80 = vmatprep.subr.mxu0 0.0
    %81 = vmatpush1.msra.mxu0 0.0
    %82 = vmatprep.subr.mxu0 0.0
    %83 = vmatpush1.msra.mxu0 0.0
    %84 = vmatprep.subr.mxu0 0.0
    %85 = vmatpush1.msra.mxu0 0.0
    %86 = vmatprep.subr.mxu0 0.0
    %87 = vmatpush1.msra.mxu0 0.0
    %88 = vmatprep.subr.mxu0 0.0
    %89 = vmatpush1.msra.mxu0 0.0
    %90 = vmatprep.subr.mxu0 0.0
    %91 = vmatpush1.msra.mxu0 0.0
    %92 = vmatprep.subr.mxu0 0.0
    %93 = vmatpush1.msra.mxu0 0.0
    %94 = vmatprep.subr.mxu0 0.0
    %95 = vmatpush1.msra.mxu0 0.0
    %96 = vmatprep.mubr.f32.mxu0 0.0
    %97 = vmatmul.mubr.f32.gmra.mrb[0].mxu0 %v27
    %v98 = vpop.f32.mrb[0].mxu0
    %v99 = vadd.f32 %v23, %v98
    %v100 = vpop.f32.mrb[0].mxu0
    %101 = vmatprep.mubr.f32.mxu0 0.0
    %102 = vmatmul.mubr.f32.gmra.mrb[0].mxu0 %v30
    %v103 = vpop.f32.mrb[0].mxu0
    %v104 = vadd.f32 %v23, %v103
    %v105 = vpop.f32.mrb[0].mxu0
    %106 = vdwg.mxu0
    %vm107 = vcmask 261120
    %108 = vst.msk [vmem:[#allocation2] sm:$0xff] %vm107, %v99
    %109 = vst.msk [vmem:[#allocation2 + $0x8] sm:$0xff] %vm107, %v104
    // Predicated region
    $region14: #{tpu_custom_call.1} parent=1 // pred_check
      _
    $region15: #{tpu_custom_call.1} parent=1 // pred_check_branch
      %111 = sbr.rel (0) target = $region17
    $region16: #{tpu_custom_call.1} parent=1 // pred_region
      %s113 = ssub.s32 256, 256
      %114 = vsyncadd [#allocation3], %s113
      %s115 = sshll.u32 [#allocation2], 4
      %s116 = int_to_ptr.vmem [resolvable:$true] %s115
      %121 = dma.vmem_to_hbm [thread:$0]  %s116, 256, %s3, [#allocation3], 128, 128, 8
    $region17: #{tpu_custom_call.1} parent=1 // pred_fallthru
      _
    // Predicated region
    $region18: #{tpu_custom_call.1} parent=1 // pred_check
      _
    $region19: #{tpu_custom_call.1} parent=1 // pred_check_branch
      %123 = sbr.rel (0) target = $region21
    $region20: #{tpu_custom_call.1} parent=1 // pred_region
      %124 = dma.done [#allocation3], 256
    $region21: #{tpu_custom_call.1} parent=1 // pred_fallthru
      _
    %125 = vsyncpa [#allocation3], 1

</llo_original>
